<compile_context>
chip_gen: v5e
topology: v5e:2x2
jax: 0.10.0
libtpu: 0.0.40
codegen_flags: <defaults>
</compile_context>

<pallas_src>
import math
import functools

import jax
import jax.numpy as jnp
from jax import lax
from jax.experimental import pallas as pl
from jax.experimental.pallas import tpu as pltpu


def _round_up(a, b):
    return ((a + b - 1) // b) * b


def _cdiv(a, b):
    return (a + b - 1) // b


def _chip_vmem_caps():
    """Returns (physical VMEM bytes, max vmem_limit_bytes we will request)."""
    cap = 128 << 20
    try:
        info = pltpu.get_tpu_info()
        cap = int(getattr(info, "vmem_capacity_bytes", cap))
    except Exception:
        pass
    if cap <= (64 << 20):          # v7x-class: 64 MiB physical -> leave headroom
        return cap, 48 << 20
    return cap, 100 << 20          # v5e / v6e: 128 MiB physical


# --------------------------------------------------------------------------
# Kernels
# --------------------------------------------------------------------------
def _dense_fused_kernel(x_ref, w_ref, o_ref, *, residual):
    """Single-pass: whole K panel + whole W resident in VMEM, no K grid axis."""
    x = x_ref[...]
    acc = jnp.dot(x, w_ref[...], preferred_element_type=jnp.float32)
    if residual:
        acc = acc + x.astype(jnp.float32)
    o_ref[...] = acc.astype(o_ref.dtype)


def _dense_tiled_kernel(x_ref, w_ref, o_ref, acc_ref, *, k_rem, residual):
    """Tiled: 3-D grid (rows, out-cols, K); f32 accumulator; masked last K tile."""
    k = pl.program_id(2)
    nk = pl.num_programs(2)

    @pl.when(k == 0)
    def _():
        acc_ref[...] = jnp.zeros_like(acc_ref)

    x = x_ref[...]
    w = w_ref[...]
    if k_rem:
        # Final K tile is partial: out-of-bounds input reads are garbage, so
        # zero the out-of-range K columns of x and rows of W before the dot.
        limit = jnp.where(k == nk - 1, k_rem, x.shape[1])
        xcol = lax.broadcasted_iota(jnp.int32, x.shape, 1)
        wrow = lax.broadcasted_iota(jnp.int32, w.shape, 0)
        x = jnp.where(xcol < limit, x, 0)
        w = jnp.where(wrow < limit, w, 0)

    acc_ref[...] += jnp.dot(x, w, preferred_element_type=jnp.float32)

    if residual:
        # K == Nout and tile_k == tile_n, so the matmul's x block at k == j is
        # exactly the residual block for output tile (i, j): no extra stream.
        @pl.when(k == pl.program_id(1))
        def _():
            acc_ref[...] += x.astype(jnp.float32)

    @pl.when(k == nk - 1)
    def _():
        o_ref[...] = acc_ref[...].astype(o_ref.dtype)


# --------------------------------------------------------------------------
# Wrapper
# --------------------------------------------------------------------------
@functools.partial(jax.jit, static_argnames=("force_tiled",))
def dense_forward(x, weight, *, force_tiled=False):
    """Pallas equivalent of Dense.forward with bias='none' (identity)."""
    N, K = x.shape
    K_w, Nout = weight.shape
    assert K_w == K, "weight first dim must match in_features"
    residual = K == Nout

    itemsize = jnp.dtype(x.dtype).itemsize
    sublane = 16 if itemsize == 2 else 8

    phys_vmem, limit_cap = _chip_vmem_caps()
    budget = int(limit_cap * 0.85)
    row_cap = 1024 if phys_vmem >= (96 << 20) else 512
    n_pad8 = _round_up(N, sublane)

    # ---- try the single-pass path: whole K panel + whole W in VMEM ---------
    chosen_rows = None
    need = 0
    if not force_tiled:
        for cand in (row_cap, 512, 256, 128, 64, 32, sublane):
            br = min(cand, n_pad8)
            need = (2 * br * K + 2 * K * Nout + 2 * br * Nout) * itemsize
            if need <= budget:
                chosen_rows = br
                break

    if chosen_rows is not None:
        # ------------------------- single-pass path -------------------------
        block_rows = chosen_rows
        # megacore (v7x has 2 TensorCores): keep >= 2 blocks on the row axis.
        if _cdiv(N, block_rows) == 1 and N >= 2 * sublane:
            block_rows = _round_up(_cdiv(N, 2), sublane)
        grid = (_cdiv(N, block_rows),)

        in_specs = [
            pl.BlockSpec((block_rows, K), lambda i: (i, 0)),
            pl.BlockSpec((K, Nout), lambda i: (0, 0)),  # W resident across rows
        ]
        out_spec = pl.BlockSpec((block_rows, Nout), lambda i: (i, 0))
        scratch = []
        kernel = functools.partial(_dense_fused_kernel, residual=residual)
        dim_sem = ("parallel",)
        bytes_accessed = (N * K + K * Nout + N * Nout) * itemsize
    else:
        # ---------------------------- tiled path -----------------------------
        tile_k = min(512, _round_up(K, 128))
        tile_n = min(512, _round_up(Nout, 128))
        if residual:
            t = min(tile_k, tile_n)
            tile_k = tile_n = t

        block_rows = min(row_cap, n_pad8)
        while block_rows > sublane:
            need = (2 * block_rows * tile_k + 2 * tile_k * tile_n
                    + 2 * block_rows * tile_n) * itemsize + block_rows * tile_n * 4
            if need <= budget:
                break
            block_rows = max(sublane, _round_up(block_rows // 2, sublane))
        need = (2 * block_rows * tile_k + 2 * tile_k * tile_n
                + 2 * block_rows * tile_n) * itemsize + block_rows * tile_n * 4

        grid_i = _cdiv(N, block_rows)
        grid_j = _cdiv(Nout, tile_n)
        grid_k = _cdiv(K, tile_k)
        k_rem = K - (grid_k - 1) * tile_k
        k_rem = 0 if k_rem == tile_k else k_rem
        grid = (grid_i, grid_j, grid_k)

        in_specs = [
            pl.BlockSpec((block_rows, tile_k), lambda i, j, k: (i, k)),
            pl.BlockSpec((tile_k, tile_n), lambda i, j, k: (k, j)),
        ]
        out_spec = pl.BlockSpec((block_rows, tile_n), lambda i, j, k: (i, j))
        scratch = [pltpu.VMEM((block_rows, tile_n), jnp.float32)]
        kernel = functools.partial(_dense_tiled_kernel, k_rem=k_rem,
                                   residual=residual)
        dim_sem = ("parallel", "parallel", "arbitrary")
        # x is re-read once per j tile, W once per i tile (k fastest axis).
        bytes_accessed = (N * K * grid_j + K * Nout * grid_i
                          + N * Nout) * itemsize

    vmem_limit = min(limit_cap, max(int(need) * 2, 16 << 20))
    cost = pl.CostEstimate(flops=2 * N * K * Nout, transcendentals=0,
                           bytes_accessed=int(bytes_accessed))

    return pl.pallas_call(
        kernel,
        out_shape=jax.ShapeDtypeStruct((N, Nout), x.dtype),
        grid_spec=pltpu.PrefetchScalarGridSpec(
            num_scalar_prefetch=0,
            grid=grid,
            in_specs=in_specs,
            out_specs=out_spec,
            scratch_shapes=scratch,
        ),
        compiler_params=pltpu.CompilerParams(
            dimension_semantics=dim_sem,
            vmem_limit_bytes=int(vmem_limit),
        ),
        cost_estimate=cost,
    )(x, weight)


def init_dense_params(key, in_features, out_features, dtype=jnp.float32):
    # reset_parameters: uniform(-stdv, stdv) with stdv = 1/sqrt(out_features)
    stdv = 1.0 / math.sqrt(out_features)
    return jax.random.uniform(
        key, (in_features, out_features), dtype=dtype, minval=-stdv, maxval=stdv
    )


# TODO(synk): bias='bn' (nn.BatchNorm1d) path not implemented; default bias='none'
# (identity) is what the reference module uses unless explicitly requested.


def _reference(x, w):
    out = x @ w
    if x.shape[1] == w.shape[1]:
        out = out + x
    return out


if __name__ == "__main__":
    key = jax.random.PRNGKey(0)

    def _run_case(key, N, fin, fout, *, force_tiled=False):
        k1, k2, key = jax.random.split(key, 3)
        x = jax.random.normal(k1, (N, fin), dtype=jnp.float32)
        w = init_dense_params(k2, fin, fout)
        out = jax.block_until_ready(dense_forward(x, w, force_tiled=force_tiled))
        assert out.shape == (N, fout)
        ref = _reference(x, w)
        assert jnp.allclose(out, ref, atol=2e-4, rtol=2e-4), (
            f"mismatch N={N} fin={fin} fout={fout} tiled={force_tiled}: "
            f"max err {jnp.max(jnp.abs(out - ref))}"
        )
        return key

    # Case 1: square layer -> single-pass path with fused residual add.
    key = _run_case(key, 8, 32, 32)

    # Case 2: non-square, no residual, unaligned dims (full-dim blocks, no pad).
    key = _run_case(key, 64, 96, 160)

    # Case 3: wider in_features, still single-pass (W resident, x streamed once).
    key = _run_case(key, 32, 640, 256)

    # Case 4: force the tiled (K-reduction) path -> exercises acc scratch and
    # the in-kernel masking of the partial last K tile (640 = 512 + 128).
    key = _run_case(key, 64, 640, 256, force_tiled=True)

    # Case 5: force the tiled path with residual -> exercises pl.when(k == j)
    # fused residual and masked partial tiles (320 < 384 tile).
    key = _run_case(key, 48, 320, 320, force_tiled=True)

    print("KERNEL_OK")
</pallas_src>

<mosaic_0001>
module attributes {stable_mosaic.version = 11 : i64} {
  func.func @_dense_fused_kernel(%arg0: i32, %arg1: memref<8x32xf32, #tpu.memory_space<vmem>>, %arg2: memref<32x32xf32, #tpu.memory_space<vmem>>, %arg3: memref<8x32xf32, #tpu.memory_space<vmem>>) attributes {dimension_semantics = [#tpu.dimension_semantics<parallel>], iteration_bounds = array<i64: 1>, scalar_prefetch = 0 : i64, scratch_operands = 0 : i64, tpu.core_type = #tpu.core_type<tc>, window_params = [{transform_indices = @transform_0, window_bounds = array<i64: 8, 32>}, {pipeline_mode = #tpu.pipeline_mode<synchronous>, transform_indices = @transform_1, window_bounds = array<i64: 32, 32>}, {transform_indices = @transform_2, window_bounds = array<i64: 8, 32>}]} {
    %c0 = arith.constant 0 : index
    %c0_0 = arith.constant 0 : index
    %0 = vector.load %arg1[%c0, %c0_0] : memref<8x32xf32, #tpu.memory_space<vmem>>, vector<8x32xf32>
    %c0_1 = arith.constant 0 : index
    %c0_2 = arith.constant 0 : index
    %1 = vector.load %arg2[%c0_1, %c0_2] : memref<32x32xf32, #tpu.memory_space<vmem>>, vector<32x32xf32>
    %cst = arith.constant dense<0.000000e+00> : vector<8x32xf32>
    %2 = tpu.matmul %0, %1, %cst {dimension_numbers = #tpu.dot_dimension_numbers<[1], [0], [0], [1], [0, 0, 1, 1], [], []>} : vector<8x32xf32>, vector<32x32xf32>, vector<8x32xf32> -> vector<8x32xf32>
    %3 = arith.addf %2, %0 : vector<8x32xf32>
    %c0_3 = arith.constant 0 : index
    %c0_4 = arith.constant 0 : index
    %4 = vector.load %arg3[%c0_3, %c0_4] : memref<8x32xf32, #tpu.memory_space<vmem>>, vector<8x32xf32>
    tpu.vector_store %arg3[%c0_3, %c0_4], %3 {strides = array<i32>} : memref<8x32xf32, #tpu.memory_space<vmem>>, vector<8x32xf32>,
    return
  }
  func.func @transform_0(%arg0: i32) -> (i32, i32) {
    %c0_i32 = arith.constant 0 : i32
    %c0_i32_0 = arith.constant 0 : i32
    return %arg0, %c0_i32 : i32, i32
  }
  func.func @transform_1(%arg0: i32) -> (i32, i32) {
    %c0_i32 = arith.constant 0 : i32
    %c0_i32_0 = arith.constant 0 : i32
    %c0_i32_1 = arith.constant 0 : i32
    return %c0_i32, %c0_i32_0 : i32, i32
  }
  func.func @transform_2(%arg0: i32) -> (i32, i32) {
    %c0_i32 = arith.constant 0 : i32
    %c0_i32_0 = arith.constant 0 : i32
    return %arg0, %c0_i32 : i32, i32
  }
}

</mosaic_0001>

<llo_original>
// kernel: dense_forward.1
$region0: #{dense_forward.1}
  #allocation0 [shape = 'u32[]', space=smem, size = 0x4, offset = 0x4, fixed_abs, tag = 'smem constant byte address 0x4 - core index']
  #allocation1 [shape = 'u32[72,128]{1,0:T(1,128)}', space=vmem, size = 0x9000, scoped, tag = 'internal scratch']
  %s0 = inlined_call_operand.hbm [shape: f32[8,32], index: 0, kind: input, shape index: {}]
  %s1 = inlined_call_operand.hbm [shape: f32[32,32], index: 1, kind: input, shape index: {}]
  %s2 = inlined_call_operand.hbm [shape: f32[8,32], index: 2, kind: output, shape index: {}]
  %s3 = sld [smem:[#allocation0]]
  $region26: #{dense_forward.1} parent=0
    _
  %s5 = ssub.s32 1, %s3
  %s6 = scalar_select 0, %s5, %s3
  $region1: #{dense_forward.1} parent=0
    #allocation2 [shape = 'u8[4096]{0}', space=vmem, size = 0x1000, scoped, tag = 'input window, operand 0, single buffered']
    #allocation3 [shape = 's32[1]{0}', space=sflag, size = 0x4, scoped, tag = 'scoped memory for dense_forward.1']
    #allocation4 [shape = 's32[1]{0}', space=sflag, size = 0x4, scoped, tag = 'scoped memory for dense_forward.1']
    #allocation5 [shape = 'u8[16384]{0}', space=vmem, size = 0x4000, scoped, tag = 'input window, operand 1, single buffered']
    #allocation6 [shape = 's32[1]{0}', space=sflag, size = 0x4, scoped, tag = 'scoped memory for dense_forward.1']
    #allocation7 [shape = 'u8[4096]{0}', space=vmem, size = 0x1000, scoped, tag = 'output window, operand 0, single buffered']
    %7 = vsyncpa [#allocation3], 0
    %8 = vsyncpa [#allocation6], 0
    %9 = vsyncpa [#allocation4], 0
    // Predicated region
    $region2: #{dense_forward.1} parent=1 // pred_check
      _
    $region3: #{dense_forward.1} parent=1 // pred_check_branch
      %11 = sbr.rel (0) target = $region5
    $region4: #{dense_forward.1} parent=1 // pred_region
      %13 = vsyncadd [#allocation3], 0
      %s15 = sshll.u32 %s0, 4
      %s16 = int_to_ptr.hbm [resolvable:$true] %s15
      %s17 = sshll.u32 [#allocation2], 4
      %s18 = int_to_ptr.vmem [resolvable:$true] %s17
      %20 = dma.hbm_to_vmem [thread:$0]  %s16, 128, %s18, [#allocation3]
    $region5: #{dense_forward.1} parent=1 // pred_fallthru
      _
    // Predicated region
    $region6: #{dense_forward.1} parent=1 // pred_check
      _
    $region7: #{dense_forward.1} parent=1 // pred_check_branch
      %22 = sbr.rel (0) target = $region9
    $region8: #{dense_forward.1} parent=1 // pred_region
      %24 = vsyncadd [#allocation6], 0
      %s25 = sshll.u32 %s1, 4
      %s26 = int_to_ptr.hbm [resolvable:$true] %s25
      %s27 = sshll.u32 [#allocation5], 4
      %s28 = int_to_ptr.vmem [resolvable:$true] %s27
      %33 = dma.hbm_to_vmem [thread:$0]  %s26, 512, %s28, [#allocation6], 128, 128, 8
    $region9: #{dense_forward.1} parent=1 // pred_fallthru
      _
    // Predicated region
    $region10: #{dense_forward.1} parent=1 // pred_check
      _
    $region11: #{dense_forward.1} parent=1 // pred_check_branch
      %35 = sbr.rel (0) target = $region13
    $region12: #{dense_forward.1} parent=1 // pred_region
      %37 = dma.done [#allocation3], 128
    $region13: #{dense_forward.1} parent=1 // pred_fallthru
      _
    // Predicated region
    $region14: #{dense_forward.1} parent=1 // pred_check
      _
    $region15: #{dense_forward.1} parent=1 // pred_check_branch
      %39 = sbr.rel (0) target = $region17
    $region16: #{dense_forward.1} parent=1 // pred_region
      %41 = dma.done [#allocation6], 512
    $region17: #{dense_forward.1} parent=1 // pred_fallthru
      _
    %v42 = vld [vmem:[#allocation2] sm:$0xff]
    %v43 = vld [vmem:[#allocation5] sm:$0xff]
    %v44 = vld [vmem:[#allocation5 + $0x8] sm:$0xff]
    %v45 = vld [vmem:[#allocation5 + $0x10] sm:$0xff]
    %v46 = vld [vmem:[#allocation5 + $0x18] sm:$0xff]
    %vm47 = vcmask 261120
    %v49 = vsel %vm47, %v42, 0
    %51 = vmatpush.msra.mxu0 0.0
    %52 = vmatpush.msra.mxu0 0.0
    %53 = vmatpush.msra.mxu0 0.0
    %54 = vmatpush.msra.mxu0 0.0
    %55 = vmatpush.msra.mxu0 0.0
    %56 = vmatpush.msra.mxu0 0.0
    %57 = vmatpush.msra.mxu0 0.0
    %58 = vmatpush.msra.mxu0 0.0
    %59 = vmatpush.msra.mxu0 0.0
    %60 = vmatpush.msra.mxu0 0.0
    %61 = vmatpush.msra.mxu0 0.0
    %62 = vmatpush.msra.mxu0 0.0
    %63 = vmatpush.msra.mxu0 %v46
    %64 = vmatpush.msra.mxu0 %v45
    %65 = vmatpush.msra.mxu0 %v44
    %66 = vmatpush.msra.mxu0 %v43
    %67 = vmatmul.f32.gmra.mxu0 %v49
    %v68 = vpop.f32.mrf.mxu0
    %v69 = vadd.f32 %v42, %v68
    %70 = vdwg.mxu0
    %71 = vst.msk [vmem:[#allocation7] sm:$0xff] %vm47, %v69
    // Predicated region
    $region18: #{dense_forward.1} parent=1 // pred_check
      _
    $region19: #{dense_forward.1} parent=1 // pred_check_branch
      %73 = sbr.rel (0) target = $region21
    $region20: #{dense_forward.1} parent=1 // pred_region
      %75 = vsyncadd [#allocation4], 0
      %s77 = sshll.u32 [#allocation7], 4
      %s78 = int_to_ptr.vmem [resolvable:$true] %s77
      %s79 = sshll.u32 %s2, 4
      %s80 = int_to_ptr.hbm [resolvable:$true] %s79
      %82 = dma.vmem_to_hbm [thread:$0]  %s78, 128, %s80, [#allocation4]
    $region21: #{dense_forward.1} parent=1 // pred_fallthru
      _
    // Predicated region
    $region22: #{dense_forward.1} parent=1 // pred_check
      _
    $region23: #{dense_forward.1} parent=1 // pred_check_branch
      %84 = sbr.rel (0) target = $region25
    $region24: #{dense_forward.1} parent=1 // pred_region
      %86 = dma.done [#allocation4], 128
    $region25: #{dense_forward.1} parent=1 // pred_fallthru
      _
    %87 = vsyncpa [#allocation3], 1
    %88 = vsyncpa [#allocation6], 1
    %89 = vsyncpa [#allocation4], 1

</llo_original>
